<compile_context>
chip_gen: v7x
topology: tpu7x:2x2x1
jax: 0.10.0
libtpu: 0.0.40
codegen_flags: <defaults>
</compile_context>

<pallas_src>
import functools

import jax
import jax.numpy as jnp
from jax.experimental import pallas as pl
from jax.experimental.pallas import tpu as pltpu


# ---------------------------------------------------------------------------
# Fused kernel: one (batch) slab per grid step.
#   x_ref    : (1, t, d)        activation block
#   wqkv_ref : (d, 3*dh)        fused q|k|v projection weight (resident)
#   wo_ref   : (dh, d)          output projection weight (resident)
#   bo_ref   : (1, d)           output projection bias (resident)
#   o_ref    : (1, t, d)        output block (lane-dense full-d store)
#   ctx_ref  : (t, dh) f32      VMEM scratch holding the merged-head context
# ---------------------------------------------------------------------------
def _fused_self_attn_kernel(
    x_ref, wqkv_ref, wo_ref, bo_ref, o_ref, ctx_ref,
    *, heads, dim_heads, scale, compute_dtype,
):
    h, e = heads, dim_heads
    dh = h * e
    cd = compute_dtype

    # Fused QKV projection: one matmul, N = 3*dh (better MXU fill than 2 calls).
    x = x_ref[0].astype(cd)                                     # (t, d)
    qkv = jnp.dot(x, wqkv_ref[...].astype(cd),
                  preferred_element_type=jnp.float32)           # (t, 3*dh) f32

    # Per-head attention, all heads in one grid step (amortizes step overhead).
    # Head split / merge is pure in-kernel slicing — no XLA transposes, no HBM.
    for hh in range(h):
        q_h = qkv[:, hh * e:(hh + 1) * e].astype(cd)                    # (t, e)
        k_h = qkv[:, dh + hh * e: dh + (hh + 1) * e].astype(cd)         # (t, e)
        v_h = qkv[:, 2 * dh + hh * e: 2 * dh + (hh + 1) * e].astype(cd)  # (t, e)

        # q @ k^T without materializing a transpose: contract on the e axis.
        s = jax.lax.dot_general(
            q_h, k_h, (((1,), (1,)), ((), ())),
            preferred_element_type=jnp.float32,
        ) * scale                                                       # (t, t)

        # Numerically-stable softmax; denominator via EUP approx reciprocal.
        s = s - jnp.max(s, axis=-1, keepdims=True)
        p = jnp.exp(s)
        p = p * pl.reciprocal(jnp.sum(p, axis=-1, keepdims=True), approx=True)

        # Context for this head, written straight into the merged (t, dh) slab.
        ctx_ref[:, hh * e:(hh + 1) * e] = jnp.dot(
            p.astype(cd), v_h, preferred_element_type=jnp.float32)      # (t, e)

    # Output projection + bias; single lane-dense store of the (t, d) result.
    out = jnp.dot(ctx_ref[...].astype(cd), wo_ref[...].astype(cd),
                  preferred_element_type=jnp.float32) + bo_ref[...]
    o_ref[0] = out.astype(o_ref.dtype)


# ---------------------------------------------------------------------------
# Wrapper
# ---------------------------------------------------------------------------
def self_attention_forward(x, params, heads, dim_heads, *,
                           compute_dtype=jnp.float32):
    """Forward pass of SelfAttention (kv == x case), fully fused in one kernel."""
    b, t, d = x.shape
    h, e = heads, dim_heads
    dh = h * e

    # Fuse q and kv projection weights into one (d, 3*dh) matrix (one-time).
    wqkv = jnp.concatenate([params["wq"], params["wkv"]], axis=1)   # (d, 3*dh)
    wo = params["wo"]                                               # (dh, d)
    bo = params["bo"].reshape(1, d)                                 # (1, d)

    kernel = functools.partial(
        _fused_self_attn_kernel,
        heads=h, dim_heads=e, scale=float(e) ** (-0.5),
        compute_dtype=compute_dtype,
    )

    return pl.pallas_call(
        kernel,
        out_shape=jax.ShapeDtypeStruct((b, t, d), x.dtype),
        grid=(b,),
        in_specs=[
            # Activation: one batch row per grid step.
            pl.BlockSpec((1, t, d), lambda i: (i, 0, 0)),
            # Weights/bias: index_map independent of the grid axis -> resident
            # in VMEM across all grid iterations (no re-DMA).
            pl.BlockSpec((d, 3 * dh), lambda i: (0, 0)),
            pl.BlockSpec((dh, d), lambda i: (0, 0)),
            pl.BlockSpec((1, d), lambda i: (0, 0)),
        ],
        out_specs=pl.BlockSpec((1, t, d), lambda i: (i, 0, 0)),
        scratch_shapes=[pltpu.VMEM((t, dh), jnp.float32)],
        compiler_params=pltpu.CompilerParams(
            dimension_semantics=("parallel",)),
    )(x, wqkv, wo, bo)


# ---------------------------------------------------------------------------
# Pure-JAX reference (mirrors the PyTorch forward) for a correctness check
# ---------------------------------------------------------------------------
def reference_forward(x, params, heads, dim_heads):
    b, t, d = x.shape
    h, e = heads, dim_heads
    dh = h * e
    q = x @ params["wq"]
    kv = x @ params["wkv"]
    k, v = kv[..., :dh], kv[..., dh:]
    merge = lambda z: z.reshape(b, t, h, e).transpose(0, 2, 1, 3).reshape(b * h, t, e)
    q, k, v = merge(q), merge(k), merge(v)
    dots = jnp.einsum("bie,bje->bij", q, k) * (float(e) ** -0.5)
    dots = jax.nn.softmax(dots, axis=-1)
    out = jnp.einsum("bij,bje->bie", dots, v)
    out = out.reshape(b, h, t, e).transpose(0, 2, 1, 3).reshape(b, t, dh)
    return out @ params["wo"] + params["bo"]


# ---------------------------------------------------------------------------
if __name__ == "__main__":
    # Module config: dim=32, heads=4 -> dim_heads=8, dim_hidden=32
    DIM, HEADS = 32, 4
    DIM_HEADS = DIM // HEADS
    DIM_HIDDEN = DIM_HEADS * HEADS
    B, T = 2, 8

    key = jax.random.PRNGKey(0)
    k_x, k_q, k_kv, k_o, k_b = jax.random.split(key, 5)

    x = jax.random.normal(k_x, (B, T, DIM), dtype=jnp.float32)

    # Deterministic synthetic parameters (stored transposed: (in, out)).
    params = {
        "wq": jax.random.normal(k_q, (DIM, DIM_HIDDEN), dtype=jnp.float32) * 0.1,
        "wkv": jax.random.normal(k_kv, (DIM, 2 * DIM_HIDDEN), dtype=jnp.float32) * 0.1,
        "wo": jax.random.normal(k_o, (DIM_HIDDEN, DIM), dtype=jnp.float32) * 0.1,
        "bo": jax.random.normal(k_b, (DIM,), dtype=jnp.float32) * 0.1,
    }

    ref = reference_forward(x, params, HEADS, DIM_HEADS)

    # Full-precision MXU path (v5e-friendly). Tolerance covers approx reciprocal.
    out_f32 = jax.block_until_ready(
        self_attention_forward(x, params, HEADS, DIM_HEADS,
                               compute_dtype=jnp.float32))
    assert out_f32.shape == (B, T, DIM)
    assert jnp.allclose(out_f32, ref, atol=5e-3, rtol=5e-3), "f32 mismatch vs reference"

    # bf16 MXU inputs with f32 accumulation (recommended for v6e / v7x).
    out_bf16 = jax.block_until_ready(
        self_attention_forward(x, params, HEADS, DIM_HEADS,
                               compute_dtype=jnp.bfloat16))
    assert jnp.allclose(out_bf16, ref, atol=5e-2, rtol=5e-2), "bf16 mismatch vs reference"

    print("KERNEL_OK")
</pallas_src>

<mosaic_0001>
module attributes {stable_mosaic.version = 11 : i64} {
  func.func @_fused_self_attn_kernel(%arg0: i32, %arg1: memref<1x8x32xf32, #tpu.memory_space<vmem>>, %arg2: memref<32x96xf32, #tpu.memory_space<vmem>>, %arg3: memref<32x32xf32, #tpu.memory_space<vmem>>, %arg4: memref<1x32xf32, #tpu.memory_space<vmem>>, %arg5: memref<1x8x32xf32, #tpu.memory_space<vmem>>, %arg6: memref<8x32xf32, #tpu.memory_space<vmem>>) attributes {dimension_semantics = [#tpu.dimension_semantics<parallel>], iteration_bounds = array<i64: 2>, scalar_prefetch = 0 : i64, scratch_operands = 1 : i64, tpu.core_type = #tpu.core_type<tc>, window_params = [{transform_indices = @transform_0, window_bounds = array<i64: 1, 8, 32>}, {pipeline_mode = #tpu.pipeline_mode<synchronous>, transform_indices = @transform_1, window_bounds = array<i64: 32, 96>}, {pipeline_mode = #tpu.pipeline_mode<synchronous>, transform_indices = @transform_2, window_bounds = array<i64: 32, 32>}, {pipeline_mode = #tpu.pipeline_mode<synchronous>, transform_indices = @transform_3, window_bounds = array<i64: 1, 32>}, {transform_indices = @transform_4, window_bounds = array<i64: 1, 8, 32>}]} {
    %c0 = arith.constant 0 : index
    %c0_0 = arith.constant 0 : index
    %c0_1 = arith.constant 0 : index
    %0 = vector.load %arg1[%c0, %c0_0, %c0_1] : memref<1x8x32xf32, #tpu.memory_space<vmem>>, vector<1x8x32xf32>
    %1 = vector.shape_cast %0 : vector<1x8x32xf32> to vector<8x32xf32>
    %c0_2 = arith.constant 0 : index
    %c0_3 = arith.constant 0 : index
    %2 = vector.load %arg2[%c0_2, %c0_3] : memref<32x96xf32, #tpu.memory_space<vmem>>, vector<32x96xf32>
    %cst = arith.constant dense<0.000000e+00> : vector<8x96xf32>
    %3 = tpu.matmul %1, %2, %cst {dimension_numbers = #tpu.dot_dimension_numbers<[1], [0], [0], [1], [0, 0, 1, 1], [], []>} : vector<8x32xf32>, vector<32x96xf32>, vector<8x96xf32> -> vector<8x96xf32>
    %4 = vector.extract_strided_slice %3 {offsets = [0, 0], sizes = [8, 8], strides = [1, 1]} : vector<8x96xf32> to vector<8x8xf32>
    %5 = vector.extract_strided_slice %3 {offsets = [0, 32], sizes = [8, 8], strides = [1, 1]} : vector<8x96xf32> to vector<8x8xf32>
    %6 = vector.extract_strided_slice %3 {offsets = [0, 64], sizes = [8, 8], strides = [1, 1]} : vector<8x96xf32> to vector<8x8xf32>
    %cst_4 = arith.constant dense<0.000000e+00> : vector<8x8xf32>
    %7 = tpu.matmul %4, %5, %cst_4 {dimension_numbers = #tpu.dot_dimension_numbers<[1], [1], [0], [0], [0, 0, 1, 0], [], []>} : vector<8x8xf32>, vector<8x8xf32>, vector<8x8xf32> -> vector<8x8xf32>
    %cst_5 = arith.constant 0.353553385 : f32
    %8 = vector.broadcast %cst_5 : f32 to vector<8x8xf32>
    %9 = arith.mulf %7, %8 : vector<8x8xf32>
    %cst_6 = arith.constant dense<0xFF800000> : vector<8xf32>
    %10 = vector.multi_reduction <maximumf>, %9, %cst_6 [1] : vector<8x8xf32> to vector<8xf32>
    %11 = vector.shape_cast %10 : vector<8xf32> to vector<8x1xf32>
    %12 = vector.broadcast %11 : vector<8x1xf32> to vector<8x8xf32>
    %13 = arith.subf %9, %12 : vector<8x8xf32>
    %14 = math.exp %13 : vector<8x8xf32>
    %cst_7 = arith.constant dense<0.000000e+00> : vector<8xf32>
    %15 = vector.multi_reduction <add>, %14, %cst_7 [1] : vector<8x8xf32> to vector<8xf32>
    %16 = vector.shape_cast %15 : vector<8xf32> to vector<8x1xf32>
    %17 = tpu.reciprocal %16 {approx = true} : vector<8x1xf32> -> vector<8x1xf32>
    %18 = vector.broadcast %17 : vector<8x1xf32> to vector<8x8xf32>
    %19 = arith.mulf %14, %18 : vector<8x8xf32>
    %cst_8 = arith.constant dense<0.000000e+00> : vector<8x8xf32>
    %20 = tpu.matmul %19, %6, %cst_8 {dimension_numbers = #tpu.dot_dimension_numbers<[1], [0], [0], [1], [0, 0, 1, 1], [], []>} : vector<8x8xf32>, vector<8x8xf32>, vector<8x8xf32> -> vector<8x8xf32>
    %c0_9 = arith.constant 0 : index
    %c0_10 = arith.constant 0 : index
    %21 = vector.load %arg6[%c0_9, %c0_10] : memref<8x32xf32, #tpu.memory_space<vmem>>, vector<8x8xf32>
    tpu.vector_store %arg6[%c0_9, %c0_10], %20 {strides = array<i32>} : memref<8x32xf32, #tpu.memory_space<vmem>>, vector<8x8xf32>,
    %22 = vector.extract_strided_slice %3 {offsets = [0, 8], sizes = [8, 8], strides = [1, 1]} : vector<8x96xf32> to vector<8x8xf32>
    %23 = vector.extract_strided_slice %3 {offsets = [0, 40], sizes = [8, 8], strides = [1, 1]} : vector<8x96xf32> to vector<8x8xf32>
    %24 = vector.extract_strided_slice %3 {offsets = [0, 72], sizes = [8, 8], strides = [1, 1]} : vector<8x96xf32> to vector<8x8xf32>
    %cst_11 = arith.constant dense<0.000000e+00> : vector<8x8xf32>
    %25 = tpu.matmul %22, %23, %cst_11 {dimension_numbers = #tpu.dot_dimension_numbers<[1], [1], [0], [0], [0, 0, 1, 0], [], []>} : vector<8x8xf32>, vector<8x8xf32>, vector<8x8xf32> -> vector<8x8xf32>
    %cst_12 = arith.constant 0.353553385 : f32
    %26 = vector.broadcast %cst_12 : f32 to vector<8x8xf32>
    %27 = arith.mulf %25, %26 : vector<8x8xf32>
    %cst_13 = arith.constant dense<0xFF800000> : vector<8xf32>
    %28 = vector.multi_reduction <maximumf>, %27, %cst_13 [1] : vector<8x8xf32> to vector<8xf32>
    %29 = vector.shape_cast %28 : vector<8xf32> to vector<8x1xf32>
    %30 = vector.broadcast %29 : vector<8x1xf32> to vector<8x8xf32>
    %31 = arith.subf %27, %30 : vector<8x8xf32>
    %32 = math.exp %31 : vector<8x8xf32>
    %cst_14 = arith.constant dense<0.000000e+00> : vector<8xf32>
    %33 = vector.multi_reduction <add>, %32, %cst_14 [1] : vector<8x8xf32> to vector<8xf32>
    %34 = vector.shape_cast %33 : vector<8xf32> to vector<8x1xf32>
    %35 = tpu.reciprocal %34 {approx = true} : vector<8x1xf32> -> vector<8x1xf32>
    %36 = vector.broadcast %35 : vector<8x1xf32> to vector<8x8xf32>
    %37 = arith.mulf %32, %36 : vector<8x8xf32>
    %cst_15 = arith.constant dense<0.000000e+00> : vector<8x8xf32>
    %38 = tpu.matmul %37, %24, %cst_15 {dimension_numbers = #tpu.dot_dimension_numbers<[1], [0], [0], [1], [0, 0, 1, 1], [], []>} : vector<8x8xf32>, vector<8x8xf32>, vector<8x8xf32> -> vector<8x8xf32>
    %c0_16 = arith.constant 0 : index
    %c8 = arith.constant 8 : index
    %39 = vector.load %arg6[%c0_16, %c8] : memref<8x32xf32, #tpu.memory_space<vmem>>, vector<8x8xf32>
    tpu.vector_store %arg6[%c0_16, %c8], %38 {strides = array<i32>} : memref<8x32xf32, #tpu.memory_space<vmem>>, vector<8x8xf32>,
    %40 = vector.extract_strided_slice %3 {offsets = [0, 16], sizes = [8, 8], strides = [1, 1]} : vector<8x96xf32> to vector<8x8xf32>
    %41 = vector.extract_strided_slice %3 {offsets = [0, 48], sizes = [8, 8], strides = [1, 1]} : vector<8x96xf32> to vector<8x8xf32>
    %42 = vector.extract_strided_slice %3 {offsets = [0, 80], sizes = [8, 8], strides = [1, 1]} : vector<8x96xf32> to vector<8x8xf32>
    %cst_17 = arith.constant dense<0.000000e+00> : vector<8x8xf32>
    %43 = tpu.matmul %40, %41, %cst_17 {dimension_numbers = #tpu.dot_dimension_numbers<[1], [1], [0], [0], [0, 0, 1, 0], [], []>} : vector<8x8xf32>, vector<8x8xf32>, vector<8x8xf32> -> vector<8x8xf32>
    %cst_18 = arith.constant 0.353553385 : f32
    %44 = vector.broadcast %cst_18 : f32 to vector<8x8xf32>
    %45 = arith.mulf %43, %44 : vector<8x8xf32>
    %cst_19 = arith.constant dense<0xFF800000> : vector<8xf32>
    %46 = vector.multi_reduction <maximumf>, %45, %cst_19 [1] : vector<8x8xf32> to vector<8xf32>
    %47 = vector.shape_cast %46 : vector<8xf32> to vector<8x1xf32>
    %48 = vector.broadcast %47 : vector<8x1xf32> to vector<8x8xf32>
    %49 = arith.subf %45, %48 : vector<8x8xf32>
    %50 = math.exp %49 : vector<8x8xf32>
    %cst_20 = arith.constant dense<0.000000e+00> : vector<8xf32>
    %51 = vector.multi_reduction <add>, %50, %cst_20 [1] : vector<8x8xf32> to vector<8xf32>
    %52 = vector.shape_cast %51 : vector<8xf32> to vector<8x1xf32>
    %53 = tpu.reciprocal %52 {approx = true} : vector<8x1xf32> -> vector<8x1xf32>
    %54 = vector.broadcast %53 : vector<8x1xf32> to vector<8x8xf32>
    %55 = arith.mulf %50, %54 : vector<8x8xf32>
    %cst_21 = arith.constant dense<0.000000e+00> : vector<8x8xf32>
    %56 = tpu.matmul %55, %42, %cst_21 {dimension_numbers = #tpu.dot_dimension_numbers<[1], [0], [0], [1], [0, 0, 1, 1], [], []>} : vector<8x8xf32>, vector<8x8xf32>, vector<8x8xf32> -> vector<8x8xf32>
    %c0_22 = arith.constant 0 : index
    %c16 = arith.constant 16 : index
    %57 = vector.load %arg6[%c0_22, %c16] : memref<8x32xf32, #tpu.memory_space<vmem>>, vector<8x8xf32>
    tpu.vector_store %arg6[%c0_22, %c16], %56 {strides = array<i32>} : memref<8x32xf32, #tpu.memory_space<vmem>>, vector<8x8xf32>,
    %58 = vector.extract_strided_slice %3 {offsets = [0, 24], sizes = [8, 8], strides = [1, 1]} : vector<8x96xf32> to vector<8x8xf32>
    %59 = vector.extract_strided_slice %3 {offsets = [0, 56], sizes = [8, 8], strides = [1, 1]} : vector<8x96xf32> to vector<8x8xf32>
    %60 = vector.extract_strided_slice %3 {offsets = [0, 88], sizes = [8, 8], strides = [1, 1]} : vector<8x96xf32> to vector<8x8xf32>
    %cst_23 = arith.constant dense<0.000000e+00> : vector<8x8xf32>
    %61 = tpu.matmul %58, %59, %cst_23 {dimension_numbers = #tpu.dot_dimension_numbers<[1], [1], [0], [0], [0, 0, 1, 0], [], []>} : vector<8x8xf32>, vector<8x8xf32>, vector<8x8xf32> -> vector<8x8xf32>
    %cst_24 = arith.constant 0.353553385 : f32
    %62 = vector.broadcast %cst_24 : f32 to vector<8x8xf32>
    %63 = arith.mulf %61, %62 : vector<8x8xf32>
    %cst_25 = arith.constant dense<0xFF800000> : vector<8xf32>
    %64 = vector.multi_reduction <maximumf>, %63, %cst_25 [1] : vector<8x8xf32> to vector<8xf32>
    %65 = vector.shape_cast %64 : vector<8xf32> to vector<8x1xf32>
    %66 = vector.broadcast %65 : vector<8x1xf32> to vector<8x8xf32>
    %67 = arith.subf %63, %66 : vector<8x8xf32>
    %68 = math.exp %67 : vector<8x8xf32>
    %cst_26 = arith.constant dense<0.000000e+00> : vector<8xf32>
    %69 = vector.multi_reduction <add>, %68, %cst_26 [1] : vector<8x8xf32> to vector<8xf32>
    %70 = vector.shape_cast %69 : vector<8xf32> to vector<8x1xf32>
    %71 = tpu.reciprocal %70 {approx = true} : vector<8x1xf32> -> vector<8x1xf32>
    %72 = vector.broadcast %71 : vector<8x1xf32> to vector<8x8xf32>
    %73 = arith.mulf %68, %72 : vector<8x8xf32>
    %cst_27 = arith.constant dense<0.000000e+00> : vector<8x8xf32>
    %74 = tpu.matmul %73, %60, %cst_27 {dimension_numbers = #tpu.dot_dimension_numbers<[1], [0], [0], [1], [0, 0, 1, 1], [], []>} : vector<8x8xf32>, vector<8x8xf32>, vector<8x8xf32> -> vector<8x8xf32>
    %c0_28 = arith.constant 0 : index
    %c24 = arith.constant 24 : index
    %75 = vector.load %arg6[%c0_28, %c24] : memref<8x32xf32, #tpu.memory_space<vmem>>, vector<8x8xf32>
    tpu.vector_store %arg6[%c0_28, %c24], %74 {strides = array<i32>} : memref<8x32xf32, #tpu.memory_space<vmem>>, vector<8x8xf32>,
    %c0_29 = arith.constant 0 : index
    %c0_30 = arith.constant 0 : index
    %76 = vector.load %arg6[%c0_29, %c0_30] : memref<8x32xf32, #tpu.memory_space<vmem>>, vector<8x32xf32>
    %c0_31 = arith.constant 0 : index
    %c0_32 = arith.constant 0 : index
    %77 = vector.load %arg3[%c0_31, %c0_32] : memref<32x32xf32, #tpu.memory_space<vmem>>, vector<32x32xf32>
    %cst_33 = arith.constant dense<0.000000e+00> : vector<8x32xf32>
    %78 = tpu.matmul %76, %77, %cst_33 {dimension_numbers = #tpu.dot_dimension_numbers<[1], [0], [0], [1], [0, 0, 1, 1], [], []>} : vector<8x32xf32>, vector<32x32xf32>, vector<8x32xf32> -> vector<8x32xf32>
    %c0_34 = arith.constant 0 : index
    %c0_35 = arith.constant 0 : index
    %79 = vector.load %arg4[%c0_34, %c0_35] : memref<1x32xf32, #tpu.memory_space<vmem>>, vector<1x32xf32>
    %80 = vector.broadcast %79 : vector<1x32xf32> to vector<8x32xf32>
    %81 = arith.addf %78, %80 : vector<8x32xf32>
    %c0_36 = arith.constant 0 : index
    %c0_37 = arith.constant 0 : index
    %c0_38 = arith.constant 0 : index
    %82 = vector.load %arg5[%c0_36, %c0_37, %c0_38] : memref<1x8x32xf32, #tpu.memory_space<vmem>>, vector<1x8x32xf32>
    %83 = vector.shape_cast %82 : vector<1x8x32xf32> to vector<8x32xf32>
    %84 = vector.shape_cast %81 : vector<8x32xf32> to vector<1x8x32xf32>
    tpu.vector_store %arg5[%c0_36, %c0_37, %c0_38], %84 {strides = array<i32>} : memref<1x8x32xf32, #tpu.memory_space<vmem>>, vector<1x8x32xf32>,
    return
  }
  func.func @transform_0(%arg0: i32) -> (i32, i32, i32) {
    %c0_i32 = arith.constant 0 : i32
    %c0_i32_0 = arith.constant 0 : i32
    %c0_i32_1 = arith.constant 0 : i32
    return %arg0, %c0_i32, %c0_i32_0 : i32, i32, i32
  }
  func.func @transform_1(%arg0: i32) -> (i32, i32) {
    %c0_i32 = arith.constant 0 : i32
    %c0_i32_0 = arith.constant 0 : i32
    %c0_i32_1 = arith.constant 0 : i32
    return %c0_i32, %c0_i32_0 : i32, i32
  }
  func.func @transform_2(%arg0: i32) -> (i32, i32) {
    %c0_i32 = arith.constant 0 : i32
    %c0_i32_0 = arith.constant 0 : i32
    %c0_i32_1 = arith.constant 0 : i32
    return %c0_i32, %c0_i32_0 : i32, i32
  }
  func.func @transform_3(%arg0: i32) -> (i32, i32) {
    %c0_i32 = arith.constant 0 : i32
    %c0_i32_0 = arith.constant 0 : i32
    %c0_i32_1 = arith.constant 0 : i32
    return %c0_i32, %c0_i32_0 : i32, i32
  }
  func.func @transform_4(%arg0: i32) -> (i32, i32, i32) {
    %c0_i32 = arith.constant 0 : i32
    %c0_i32_0 = arith.constant 0 : i32
    %c0_i32_1 = arith.constant 0 : i32
    return %arg0, %c0_i32, %c0_i32_0 : i32, i32, i32
  }
}

</mosaic_0001>

<llo_original>
// kernel: tpu_custom_call.1
$region0: #{tpu_custom_call.1}
  #allocation0 [shape = 'u32[]', space=smem, size = 0x4, offset = 0x4, fixed_abs, tag = 'smem constant byte address 0x4 - core index']
  #allocation1 [shape = 'u32[144,128]{1,0:T(1,128)}', space=vmem, size = 0x12000, scoped, tag = 'internal scratch']
  #allocation2 [shape = 'f32[8,32]{1,0:T(8,128)}', space=vmem, size = 0x1000, scoped, tag = 'scratch operand']
  %s0 = inlined_call_operand.hbm [shape: f32[2,8,32], index: 0, kind: input, shape index: {}]
  %s1 = inlined_call_operand.hbm [shape: f32[32,96], index: 1, kind: input, shape index: {}]
  %s2 = inlined_call_operand.hbm [shape: f32[32,32], index: 2, kind: input, shape index: {}]
  %s3 = inlined_call_operand.vmem [shape: f32[1,32], index: 3, kind: input, shape index: {}]
  %s4 = inlined_call_operand.hbm [shape: f32[2,8,32], index: 4, kind: output, shape index: {}]
  %s5 = sld [smem:[#allocation0]]
  $region61: #{tpu_custom_call.1} parent=0
    _
  %s7 = ssub.s32 1, %s5
  %s8 = scalar_select 0, %s7, %s5
  $region1: #{tpu_custom_call.1} parent=0
    #allocation3 [shape = 'u8[8192]{0}', space=vmem, size = 0x2000, scoped, tag = 'input window, operand 0']
    #allocation4 [shape = 's32[2]{0}', space=sflag, size = 0x8, scoped, tag = 'scoped memory for tpu_custom_call.1']
    #allocation5 [shape = 's32[2]{0}', space=sflag, size = 0x8, scoped, tag = 'scoped memory for tpu_custom_call.1']
    #allocation6 [shape = 'u8[16384]{0}', space=vmem, size = 0x4000, scoped, tag = 'input window, operand 1, single buffered']
    #allocation7 [shape = 's32[1]{0}', space=sflag, size = 0x4, scoped, tag = 'scoped memory for tpu_custom_call.1']
    #allocation8 [shape = 'u8[16384]{0}', space=vmem, size = 0x4000, scoped, tag = 'input window, operand 2, single buffered']
    #allocation9 [shape = 'u8[8192]{0}', space=vmem, size = 0x2000, scoped, tag = 'output window, operand 0']
    %9 = vsyncpa [#allocation4], 0
    %s10 = scalar_lea.sflag [#allocation4], 1
    %11 = vsyncpa %s10, 0
    %12 = vsyncpa [#allocation7], 0
    %13 = vsyncpa [#allocation5], 0
    %s14 = scalar_lea.sflag [#allocation5], 1
    %15 = vsyncpa %s14, 0
    loop: start=0, step=1, limit=4
    $region2: #{tpu_custom_call.1} parent=1 // loop_pre_header
      _
    $region3: #{tpu_custom_call.1} parent=1 // loop_header
      %s17 = sphi 0, %s21
      %p18 = scmp.ge.s32.totalorder %s17, 4
      %s27 = sphi 0, %s29
      %s30 = sphi 0, %s27
      %s31 = sphi 0, %s30
      %s47 = sphi 0, %s31
      %s51 = sphi 0, %s51
      %s53 = sphi 0, %s51
      %s54 = sphi 0, %s53
      %s68 = sphi 0, %s54
      %s72 = sphi 0, %s72
      %s74 = sphi 0, %s72
      %s75 = sphi 0, %s74
      %s89 = sphi 0, %s75
      %s93 = sphi 0, %s93
      %s95 = sphi 0, %s93
      %s96 = sphi 0, %s95
      %s110 = sphi 0, %s96
      %s116 = sphi 0, %s118
      %s119 = sphi 0, %s116
      %s120 = sphi 0, %s119
      %s136 = sphi 0, %s120
    $region4: #{tpu_custom_call.1} parent=1 // loop_header_branch
      %20 = sbr.rel (%p18) target = $region8
    $region5: #{tpu_custom_call.1} parent=1 // loop_body
      %s22 = ssub.s32 %s17, 1
      %s23 = ssub.s32 %s17, 2
      %s24 = sadd.s32 %s17, 1
      %s25 = ssub.s32 %s17, %s24
      %p26 = scmp.eq.s32.totalorder %s25, 0
      %s28 = sadd.s32 %s27, 1
      %s29 = scalar_select %p26, %s27, %s28
      %p32 = pneg %p26
      %p33 = scmp.eq.s32.totalorder %s17, 1
      %p34 = por %p32, %p33
      %p35 = scmp.ne.s32.totalorder %s27, %s30
      %p36 = scmp.eq.s32.totalorder %s17, 0
      %p37 = por %p35, %p36
      %p38 = scmp.ne.s32.totalorder %s27, %s30
      %p39 = scmp.eq.s32.totalorder %s22, 1
      %p40 = por %p38, %p39
      %p41 = scmp.ne.s32.totalorder %s30, %s31
      %p42 = scmp.eq.s32.totalorder %s22, 0
      %p43 = por %p41, %p42
      %p44 = scmp.ne.s32.totalorder %s30, %s31
      %p45 = scmp.eq.s32.totalorder %s23, 1
      %p46 = por %p44, %p45
      %p48 = scmp.ne.s32.totalorder %s31, %s47
      %p49 = scmp.eq.s32.totalorder %s23, 0
      %p50 = por %p48, %p49
      %s52 = sadd.s32 %s51, 1
      %p55 = scmp.eq.s32.totalorder %s17, 1
      %p56 = scmp.ne.s32.totalorder %s51, %s53
      %p57 = scmp.eq.s32.totalorder %s17, 0
      %p58 = por %p56, %p57
      %p59 = scmp.ne.s32.totalorder %s51, %s53
      %p60 = scmp.eq.s32.totalorder %s22, 1
      %p61 = por %p59, %p60
      %p62 = scmp.ne.s32.totalorder %s53, %s54
      %p63 = scmp.eq.s32.totalorder %s22, 0
      %p64 = por %p62, %p63
      %p65 = scmp.ne.s32.totalorder %s53, %s54
      %p66 = scmp.eq.s32.totalorder %s23, 1
      %p67 = por %p65, %p66
      %p69 = scmp.ne.s32.totalorder %s54, %s68
      %p70 = scmp.eq.s32.totalorder %s23, 0
      %p71 = por %p69, %p70
      %s73 = sadd.s32 %s72, 1
      %p76 = scmp.eq.s32.totalorder %s17, 1
      %p77 = scmp.ne.s32.totalorder %s72, %s74
      %p78 = scmp.eq.s32.totalorder %s17, 0
      %p79 = por %p77, %p78
      %p80 = scmp.ne.s32.totalorder %s72, %s74
      %p81 = scmp.eq.s32.totalorder %s22, 1
      %p82 = por %p80, %p81
      %p83 = scmp.ne.s32.totalorder %s74, %s75
      %p84 = scmp.eq.s32.totalorder %s22, 0
      %p85 = por %p83, %p84
      %p86 = scmp.ne.s32.totalorder %s74, %s75
      %p87 = scmp.eq.s32.totalorder %s23, 1
      %p88 = por %p86, %p87
      %p90 = scmp.ne.s32.totalorder %s75, %s89
      %p91 = scmp.eq.s32.totalorder %s23, 0
      %p92 = por %p90, %p91
      %s94 = sadd.s32 %s93, 1
      %p97 = scmp.eq.s32.totalorder %s17, 1
      %p98 = scmp.ne.s32.totalorder %s93, %s95
      %p99 = scmp.eq.s32.totalorder %s17, 0
      %p100 = por %p98, %p99
      %p101 = scmp.ne.s32.totalorder %s93, %s95
      %p102 = scmp.eq.s32.totalorder %s22, 1
      %p103 = por %p101, %p102
      %p104 = scmp.ne.s32.totalorder %s95, %s96
      %p105 = scmp.eq.s32.totalorder %s22, 0
      %p106 = por %p104, %p105
      %p107 = scmp.ne.s32.totalorder %s95, %s96
      %p108 = scmp.eq.s32.totalorder %s23, 1
      %p109 = por %p107, %p108
      %p111 = scmp.ne.s32.totalorder %s96, %s110
      %p112 = scmp.eq.s32.totalorder %s23, 0
      %p113 = por %p111, %p112
      %s114 = ssub.s32 %s17, %s24
      %p115 = scmp.eq.s32.totalorder %s114, 0
      %s117 = sadd.s32 %s116, 1
      %s118 = scalar_select %p115, %s116, %s117
      %p121 = pneg %p115
      %p122 = scmp.eq.s32.totalorder %s17, 1
      %p123 = por %p121, %p122
      %p124 = scmp.ne.s32.totalorder %s116, %s119
      %p125 = scmp.eq.s32.totalorder %s17, 0
      %p126 = por %p124, %p125
      %p127 = scmp.ne.s32.totalorder %s116, %s119
      %p128 = scmp.eq.s32.totalorder %s22, 1
      %p129 = por %p127, %p128
      %p130 = scmp.ne.s32.totalorder %s119, %s120
      %p131 = scmp.eq.s32.totalorder %s22, 0
      %p132 = por %p130, %p131
      %p133 = scmp.ne.s32.totalorder %s119, %s120
      %p134 = scmp.eq.s32.totalorder %s23, 1
      %p135 = por %p133, %p134
      %p137 = scmp.ne.s32.totalorder %s120, %s136
      %p138 = scmp.eq.s32.totalorder %s23, 0
      %p139 = por %p137, %p138
      %p140 = scmp.le.s32.totalorder 1, %s17
      %p141 = scmp.lt.s32.totalorder %s17, 3
      %p142 = pnand %p140, %p141
      %p143 = pneg %p142
      // Predicated region
      $region9: #{tpu_custom_call.1} parent=5 // pred_check
        _
      $region10: #{tpu_custom_call.1} parent=5 // pred_check_branch
        %145 = sbr.rel (%p142) target = $region12
      $region11: #{tpu_custom_call.1} parent=5 // pred_region
        %s146 = ssub.s32 %s17, 1
        // Predicated region
        $region13: #{tpu_custom_call.1} parent=11 // pred_check
          %p147 = pneg %p64
        $region14: #{tpu_custom_call.1} parent=11 // pred_check_branch
          %149 = sbr.rel (%p147) target = $region16
        $region15: #{tpu_custom_call.1} parent=11 // pred_region
          %s151 = ssub.s32 512, 512
          %152 = vsyncadd [#allocation7], %s151
          %s153 = sshll.u32 [#allocation6], 4
          %s154 = int_to_ptr.vmem [resolvable:$true] %s153
          %159 = dma.hbm_to_vmem [thread:$0]  %s1, 512, %s154, [#allocation7], 128, 128, 8
        $region16: #{tpu_custom_call.1} parent=11 // pred_fallthru
          _
        // Predicated region
        $region17: #{tpu_custom_call.1} parent=11 // pred_check
          %p160 = pneg %p85
        $region18: #{tpu_custom_call.1} parent=11 // pred_check_branch
          %162 = sbr.rel (%p160) target = $region20
        $region19: #{tpu_custom_call.1} parent=11 // pred_region
          %s164 = ssub.s32 512, 512
          %165 = vsyncadd [#allocation7], %s164
          %s166 = sshll.u32 [#allocation8], 4
          %s167 = int_to_ptr.vmem [resolvable:$true] %s166
          %172 = dma.hbm_to_vmem [thread:$0]  %s2, 512, %s167, [#allocation7], 128, 128, 8
        $region20: #{tpu_custom_call.1} parent=11 // pred_fallthru
          _
        // Predicated region
        $region21: #{tpu_custom_call.1} parent=11 // pred_check
          %p173 = pneg %p106
        $region22: #{tpu_custom_call.1} parent=11 // pred_check_branch
          %175 = sbr.rel (%p173) target = $region24
        $region23: #{tpu_custom_call.1} parent=11 // pred_region
          _
        $region24: #{tpu_custom_call.1} parent=11 // pred_fallthru
          _
      $region12: #{tpu_custom_call.1} parent=5 // pred_fallthru
        _
      %p176 = scmp.lt.s32.totalorder %s17, 2
      // Predicated region
      $region25: #{tpu_custom_call.1} parent=5 // pred_check
        %p177 = pneg %p176
      $region26: #{tpu_custom_call.1} parent=5 // pred_check_branch
        %179 = sbr.rel (%p177) target = $region28
      $region27: #{tpu_custom_call.1} parent=5 // pred_region
        // Predicated region
        $region29: #{tpu_custom_call.1} parent=27 // pred_check
          %p180 = pneg %p37
        $region30: #{tpu_custom_call.1} parent=27 // pred_check_branch
          %182 = sbr.rel (%p180) target = $region32
        $region31: #{tpu_custom_call.1} parent=27 // pred_region
          %s183 = sand.u32 %s27, 1
          %s184 = scalar_lea.sflag [#allocation4], %s183
          %s185 = sand.u32 %s27, 1
          %s186 = smul.addr %s185, 8
          %s187 = scalar_lea.vmem [#allocation3], %s186
          %s189 = ssub.s32 128, 128
          %190 = vsyncadd %s184, %s189
          %s191 = smul.addr %s17, 128
          %s192 = scalar_lea.hbm %s0, %s191
          %s194 = sshll.u32 %s187, 4
          %s195 = int_to_ptr.vmem [resolvable:$true] %s194
          %197 = dma.hbm_to_vmem [thread:$0]  %s192, 128, %s195, %s184
        $region32: #{tpu_custom_call.1} parent=27 // pred_fallthru
          _
      $region28: #{tpu_custom_call.1} parent=5 // pred_fallthru
        _
      %p198 = scmp.le.s32.totalorder 1, %s17
      %p199 = scmp.lt.s32.totalorder %s17, 3
      %p200 = pnand %p198, %p199
      %p201 = pneg %p200
      // Predicated region
      $region33: #{tpu_custom_call.1} parent=5 // pred_check
        _
      $region34: #{tpu_custom_call.1} parent=5 // pred_check_branch
        %203 = sbr.rel (%p200) target = $region36
      $region35: #{tpu_custom_call.1} parent=5 // pred_region
        %s204 = ssub.s32 %s17, 1
        %s205 = sand.u32 %s30, 1
        %s206 = scalar_lea.sflag [#allocation4], %s205
        %s207 = sand.u32 %s30, 1
        %s208 = smul.addr %s207, 8
        %s209 = scalar_lea.vmem [#allocation3], %s208
        // Predicated region
        $region37: #{tpu_custom_call.1} parent=35 // pred_check
          %p210 = pneg %p43
        $region38: #{tpu_custom_call.1} parent=35 // pred_check_branch
          %212 = sbr.rel (%p210) target = $region40
        $region39: #{tpu_custom_call.1} parent=35 // pred_region
          %213 = dma.done %s206, 128
        $region40: #{tpu_custom_call.1} parent=35 // pred_fallthru
          _
        // Predicated region
        $region41: #{tpu_custom_call.1} parent=35 // pred_check
          %p214 = pneg %p64
        $region42: #{tpu_custom_call.1} parent=35 // pred_check_branch
          %216 = sbr.rel (%p214) target = $region44
        $region43: #{tpu_custom_call.1} parent=35 // pred_region
          %217 = dma.done [#allocation7], 512
        $region44: #{tpu_custom_call.1} parent=35 // pred_fallthru
          _
        // Predicated region
        $region45: #{tpu_custom_call.1} parent=35 // pred_check
          %p218 = pneg %p85
        $region46: #{tpu_custom_call.1} parent=35 // pred_check_branch
          %220 = sbr.rel (%p218) target = $region48
        $region47: #{tpu_custom_call.1} parent=35 // pred_region
          %221 = dma.done [#allocation7], 512
        $region48: #{tpu_custom_call.1} parent=35 // pred_fallthru
          _
        %s222 = sand.u32 %s30, 1
        %s223 = scalar_lea.sflag [#allocation4], %s222
        %s224 = sand.u32 %s30, 1
        %s225 = smul.addr %s224, 8
        %s226 = scalar_lea.vmem [#allocation3], %s225
        %p227 = pneg %p43
        %p228 = pneg %p40
        %p229 = pneg %p64
        %p230 = pneg %p61
        %p231 = pneg %p85
        %p232 = pneg %p82
        %p233 = pneg %p106
        %p234 = pneg %p103
        %p235 = pneg %p132
        %p236 = pneg %p129
        %s237 = sand.u32 %s119, 1
        %s238 = scalar_lea.sflag [#allocation5], %s237
        %s239 = sand.u32 %s119, 1
        %s240 = smul.addr %s239, 8
        %s241 = scalar_lea.vmem [#allocation9], %s240
        %v242 = vld [vmem:[%s209] sm:$0xff]
        %v243 = vld [vmem:[#allocation6] sm:$0xff]
        %v244 = vld [vmem:[#allocation6 + $0x8] sm:$0xff]
        %v245 = vld [vmem:[#allocation6 + $0x10] sm:$0xff]
        %v246 = vld [vmem:[#allocation6 + $0x18] sm:$0xff]
        %vm247 = vcmask 261120
        %v249 = vsel %vm247, %v242, 0
        %251 = vmatprep.subr.mxu0 0.0
        %252 = vmatpush1.msra.mxu0 %v243
        %253 = vmatprep.subr.mxu0 0.0
        %254 = vmatpush1.msra.mxu0 %v244
        %255 = vmatprep.subr.mxu0 0.0
        %256 = vmatpush1.msra.mxu0 %v245
        %257 = vmatprep.subr.mxu0 0.0
        %258 = vmatpush1.msra.mxu0 %v246
        %259 = vmatprep.subr.mxu0 0.0
        %260 = vmatpush1.msra.mxu0 0.0
        %261 = vmatprep.subr.mxu0 0.0
        %262 = vmatpush1.msra.mxu0 0.0
        %263 = vmatprep.subr.mxu0 0.0
        %264 = vmatpush1.msra.mxu0 0.0
        %265 = vmatprep.subr.mxu0 0.0
        %266 = vmatpush1.msra.mxu0 0.0
        %267 = vmatprep.subr.mxu0 0.0
        %268 = vmatpush1.msra.mxu0 0.0
        %269 = vmatprep.subr.mxu0 0.0
        %270 = vmatpush1.msra.mxu0 0.0
        %271 = vmatprep.subr.mxu0 0.0
        %272 = vmatpush1.msra.mxu0 0.0
        %273 = vmatprep.subr.mxu0 0.0
        %274 = vmatpush1.msra.mxu0 0.0
        %275 = vmatprep.subr.mxu0 0.0
        %276 = vmatpush1.msra.mxu0 0.0
        %277 = vmatprep.subr.mxu0 0.0
        %278 = vmatpush1.msra.mxu0 0.0
        %279 = vmatprep.subr.mxu0 0.0
        %280 = vmatpush1.msra.mxu0 0.0
        %281 = vmatprep.subr.mxu0 0.0
        %282 = vmatpush1.msra.mxu0 0.0
        %283 = vmatprep.subr.mxu0 0.0
        %284 = vmatpush1.msra.mxu0 0.0
        %285 = vmatprep.subr.mxu0 0.0
        %286 = vmatpush1.msra.mxu0 0.0
        %287 = vmatprep.subr.mxu0 0.0
        %288 = vmatpush1.msra.mxu0 0.0
        %289 = vmatprep.subr.mxu0 0.0
        %290 = vmatpush1.msra.mxu0 0.0
        %291 = vmatprep.subr.mxu0 0.0
        %292 = vmatpush1.msra.mxu0 0.0
        %293 = vmatprep.subr.mxu0 0.0
        %294 = vmatpush1.msra.mxu0 0.0
        %295 = vmatprep.subr.mxu0 0.0
        %296 = vmatpush1.msra.mxu0 0.0
        %297 = vmatprep.subr.mxu0 0.0
        %298 = vmatpush1.msra.mxu0 0.0
        %299 = vmatprep.subr.mxu0 0.0
        %300 = vmatpush1.msra.mxu0 0.0
        %301 = vmatprep.subr.mxu0 0.0
        %302 = vmatpush1.msra.mxu0 0.0
        %303 = vmatprep.subr.mxu0 0.0
        %304 = vmatpush1.msra.mxu0 0.0
        %305 = vmatprep.subr.mxu0 0.0
        %306 = vmatpush1.msra.mxu0 0.0
        %307 = vmatprep.subr.mxu0 0.0
        %308 = vmatpush1.msra.mxu0 0.0
        %309 = vmatprep.subr.mxu0 0.0
        %310 = vmatpush1.msra.mxu0 0.0
        %311 = vmatprep.subr.mxu0 0.0
        %312 = vmatpush1.msra.mxu0 0.0
        %313 = vmatprep.subr.mxu0 0.0
        %314 = vmatpush1.msra.mxu0 0.0
        %315 = vmatprep.mubr.f32.mxu0 0.0
        %316 = vmatmul.mubr.f32.gmra.mrb[0].mxu0 %v249
        %v317 = vpop.f32.mrb[0].mxu0
        %v318 = vadd.f32 0.0, %v317
        %v319 = vpop.f32.mrb[0].mxu0
        %320 = vdwg.mxu0
        %322 = vrot.lane.b32.xlu0 %v318, 96
        %v323 = vpop.permute.xlu0 %322
        %vm324 = vcmask 64512
        %v325 = vsel %vm324, %v318, 0
        %v327 = vsel %vm324, %v323, 0
        %329 = vmatprep.subr.mxu0 0.0
        %330 = vmatpush1.xpose.msra.mxu0 %v327
        %331 = vmatprep.subr.mxu0 0.0
        %332 = vmatpush1.xpose.msra.mxu0 0.0
        %333 = vmatprep.subr.mxu0 0.0
        %334 = vmatpush1.xpose.msra.mxu0 0.0
        %335 = vmatprep.subr.mxu0 0.0
        %336 = vmatpush1.xpose.msra.mxu0 0.0
        %337 = vmatprep.subr.mxu0 0.0
        %338 = vmatpush1.xpose.msra.mxu0 0.0
        %339 = vmatprep.subr.mxu0 0.0
        %340 = vmatpush1.xpose.msra.mxu0 0.0
        %341 = vmatprep.subr.mxu0 0.0
        %342 = vmatpush1.xpose.msra.mxu0 0.0
        %343 = vmatprep.subr.mxu0 0.0
        %344 = vmatpush1.xpose.msra.mxu0 0.0
        %345 = vmatprep.subr.mxu0 0.0
        %346 = vmatpush1.xpose.msra.mxu0 0.0
        %347 = vmatprep.subr.mxu0 0.0
        %348 = vmatpush1.xpose.msra.mxu0 0.0
        %349 = vmatprep.subr.mxu0 0.0
        %350 = vmatpush1.xpose.msra.mxu0 0.0
        %351 = vmatprep.subr.mxu0 0.0
        %352 = vmatpush1.xpose.msra.mxu0 0.0
        %353 = vmatprep.subr.mxu0 0.0
        %354 = vmatpush1.xpose.msra.mxu0 0.0
        %355 = vmatprep.subr.mxu0 0.0
        %356 = vmatpush1.xpose.msra.mxu0 0.0
        %357 = vmatprep.subr.mxu0 0.0
        %358 = vmatpush1.xpose.msra.mxu0 0.0
        %359 = vmatprep.subr.mxu0 0.0
        %360 = vmatpush1.xpose.msra.mxu0 0.0
        %361 = vmatprep.subr.mxu0 0.0
        %362 = vmatpush1.xpose.msra.mxu0 0.0
        %363 = vmatprep.subr.mxu0 0.0
        %364 = vmatpush1.xpose.msra.mxu0 0.0
        %365 = vmatprep.subr.mxu0 0.0
        %366 = vmatpush1.xpose.msra.mxu0 0.0
        %367 = vmatprep.subr.mxu0 0.0
        %368 = vmatpush1.xpose.msra.mxu0 0.0
        %369 = vmatprep.subr.mxu0 0.0
        %370 = vmatpush1.xpose.msra.mxu0 0.0
        %371 = vmatprep.subr.mxu0 0.0
        %372 = vmatpush1.xpose.msra.mxu0 0.0
        %373 = vmatprep.subr.mxu0 0.0
        %374 = vmatpush1.xpose.msra.mxu0 0.0
        %375 = vmatprep.subr.mxu0 0.0
        %376 = vmatpush1.xpose.msra.mxu0 0.0
        %377 = vmatprep.subr.mxu0 0.0
        %378 = vmatpush1.xpose.msra.mxu0 0.0
        %379 = vmatprep.subr.mxu0 0.0
        %380 = vmatpush1.xpose.msra.mxu0 0.0
        %381 = vmatprep.subr.mxu0 0.0
        %382 = vmatpush1.xpose.msra.mxu0 0.0
        %383 = vmatprep.subr.mxu0 0.0
        %384 = vmatpush1.xpose.msra.mxu0 0.0
        %385 = vmatprep.subr.mxu0 0.0
        %386 = vmatpush1.xpose.msra.mxu0 0.0
        %387 = vmatprep.subr.mxu0 0.0
        %388 = vmatpush1.xpose.msra.mxu0 0.0
        %389 = vmatprep.subr.mxu0 0.0
        %390 = vmatpush1.xpose.msra.mxu0 0.0
        %391 = vmatprep.subr.mxu0 0.0
        %392 = vmatpush1.xpose.msra.mxu0 0.0
        %393 = vmatprep.mubr.f32.mxu0 0.0
        %394 = vmatmul.mubr.f32.gmra.mrb[0].mxu0 %v325
        %v395 = vpop.f32.mrb[0].mxu0
        %v396 = vadd.f32 0.0, %v395
        %v397 = vpop.f32.mrb[0].mxu0
        %398 = vdwg.mxu0
        %v399 = vmul.f32 %v396, 0.35355338
        %v400 = vsel %vm324, %v399, -inf
        %401 = vmax.xlane.f32.xlu0 %v400
        %v402 = vpop.xlane.xlu0 %401
        %v403 = vsub.f32 %v399, %v402
        %v404 = vmul.f32 %v403, 1.442695
        %v405 = vpow.pop %v404
        %v406 = vsel %vm324, %v405, 0.0
        %407 = vadd.xlane.f32.xlu0 %v406
        %v408 = vpop.xlane.xlu0 %407
        %v409 = vrcp.pop %v408
        %v410 = vmul.f32 %v405, %v409
        %411 = vrot.lane.b32.xlu0 %v318, 64
        %v412 = vpop.permute.xlu0 %411
        %v415 = vsel %vm324, %v410, 0
        %417 = vmatprep.subr.mxu0 0.0
        %418 = vmatpush1.msra.mxu0 %v412
        %419 = vmatprep.subr.mxu0 0.0
        %420 = vmatpush1.msra.mxu0 0.0
        %421 = vmatprep.subr.mxu0 0.0
        %422 = vmatpush1.msra.mxu0 0.0
        %423 = vmatprep.subr.mxu0 0.0
        %424 = vmatpush1.msra.mxu0 0.0
        %425 = vmatprep.subr.mxu0 0.0
        %426 = vmatpush1.msra.mxu0 0.0
        %427 = vmatprep.subr.mxu0 0.0
        %428 = vmatpush1.msra.mxu0 0.0
        %429 = vmatprep.subr.mxu0 0.0
        %430 = vmatpush1.msra.mxu0 0.0
        %431 = vmatprep.subr.mxu0 0.0
        %432 = vmatpush1.msra.mxu0 0.0
        %433 = vmatprep.subr.mxu0 0.0
        %434 = vmatpush1.msra.mxu0 0.0
        %435 = vmatprep.subr.mxu0 0.0
        %436 = vmatpush1.msra.mxu0 0.0
        %437 = vmatprep.subr.mxu0 0.0
        %438 = vmatpush1.msra.mxu0 0.0
        %439 = vmatprep.subr.mxu0 0.0
        %440 = vmatpush1.msra.mxu0 0.0
        %441 = vmatprep.subr.mxu0 0.0
        %442 = vmatpush1.msra.mxu0 0.0
        %443 = vmatprep.subr.mxu0 0.0
        %444 = vmatpush1.msra.mxu0 0.0
        %445 = vmatprep.subr.mxu0 0.0
        %446 = vmatpush1.msra.mxu0 0.0
        %447 = vmatprep.subr.mxu0 0.0
        %448 = vmatpush1.msra.mxu0 0.0
        %449 = vmatprep.subr.mxu0 0.0
        %450 = vmatpush1.msra.mxu0 0.0
        %451 = vmatprep.subr.mxu0 0.0
        %452 = vmatpush1.msra.mxu0 0.0
        %453 = vmatprep.subr.mxu0 0.0
        %454 = vmatpush1.msra.mxu0 0.0
        %455 = vmatprep.subr.mxu0 0.0
        %456 = vmatpush1.msra.mxu0 0.0
        %457 = vmatprep.subr.mxu0 0.0
        %458 = vmatpush1.msra.mxu0 0.0
        %459 = vmatprep.subr.mxu0 0.0
        %460 = vmatpush1.msra.mxu0 0.0
        %461 = vmatprep.subr.mxu0 0.0
        %462 = vmatpush1.msra.mxu0 0.0
        %463 = vmatprep.subr.mxu0 0.0
        %464 = vmatpush1.msra.mxu0 0.0
        %465 = vmatprep.subr.mxu0 0.0
        %466 = vmatpush1.msra.mxu0 0.0
        %467 = vmatprep.subr.mxu0 0.0
        %468 = vmatpush1.msra.mxu0 0.0
        %469 = vmatprep.subr.mxu0 0.0
        %470 = vmatpush1.msra.mxu0 0.0
        %471 = vmatprep.subr.mxu0 0.0
        %472 = vmatpush1.msra.mxu0 0.0
        %473 = vmatprep.subr.mxu0 0.0
        %474 = vmatpush1.msra.mxu0 0.0
        %475 = vmatprep.subr.mxu0 0.0
        %476 = vmatpush1.msra.mxu0 0.0
        %477 = vmatprep.subr.mxu0 0.0
        %478 = vmatpush1.msra.mxu0 0.0
        %479 = vmatprep.subr.mxu0 0.0
        %480 = vmatpush1.msra.mxu0 0.0
        %481 = vmatprep.mubr.f32.mxu0 0.0
        %482 = vmatmul.mubr.f32.gmra.mrb[0].mxu0 %v415
        %v483 = vpop.f32.mrb[0].mxu0
        %v484 = vadd.f32 0.0, %v483
        %v485 = vpop.f32.mrb[0].mxu0
        %486 = vdwg.mxu0
        %487 = vst.msk [vmem:[#allocation2] sm:$0xff] %vm324, %v484
        %488 = vrot.lane.b32.xlu0 %v318, 120
        %v489 = vpop.permute.xlu0 %488
        %490 = vrot.lane.b32.xlu0 %v318, 88
        %v491 = vpop.permute.xlu0 %490
        %v492 = vsel %vm324, %v489, 0
        %v494 = vsel %vm324, %v491, 0
        %496 = vmatprep.subr.mxu0 0.0
        %497 = vmatpush1.xpose.msra.mxu0 %v494
        %498 = vmatprep.subr.mxu0 0.0
        %499 = vmatpush1.xpose.msra.mxu0 0.0
        %500 = vmatprep.subr.mxu0 0.0
        %501 = vmatpush1.xpose.msra.mxu0 0.0
        %502 = vmatprep.subr.mxu0 0.0
        %503 = vmatpush1.xpose.msra.mxu0 0.0
        %504 = vmatprep.subr.mxu0 0.0
        %505 = vmatpush1.xpose.msra.mxu0 0.0
        %506 = vmatprep.subr.mxu0 0.0
        %507 = vmatpush1.xpose.msra.mxu0 0.0
        %508 = vmatprep.subr.mxu0 0.0
        %509 = vmatpush1.xpose.msra.mxu0 0.0
        %510 = vmatprep.subr.mxu0 0.0
        %511 = vmatpush1.xpose.msra.mxu0 0.0
        %512 = vmatprep.subr.mxu0 0.0
        %513 = vmatpush1.xpose.msra.mxu0 0.0
        %514 = vmatprep.subr.mxu0 0.0
        %515 = vmatpush1.xpose.msra.mxu0 0.0
        %516 = vmatprep.subr.mxu0 0.0
        %517 = vmatpush1.xpose.msra.mxu0 0.0
        %518 = vmatprep.subr.mxu0 0.0
        %519 = vmatpush1.xpose.msra.mxu0 0.0
        %520 = vmatprep.subr.mxu0 0.0
        %521 = vmatpush1.xpose.msra.mxu0 0.0
        %522 = vmatprep.subr.mxu0 0.0
        %523 = vmatpush1.xpose.msra.mxu0 0.0
        %524 = vmatprep.subr.mxu0 0.0
        %525 = vmatpush1.xpose.msra.mxu0 0.0
        %526 = vmatprep.subr.mxu0 0.0
        %527 = vmatpush1.xpose.msra.mxu0 0.0
        %528 = vmatprep.subr.mxu0 0.0
        %529 = vmatpush1.xpose.msra.mxu0 0.0
        %530 = vmatprep.subr.mxu0 0.0
        %531 = vmatpush1.xpose.msra.mxu0 0.0
        %532 = vmatprep.subr.mxu0 0.0
        %533 = vmatpush1.xpose.msra.mxu0 0.0
        %534 = vmatprep.subr.mxu0 0.0
        %535 = vmatpush1.xpose.msra.mxu0 0.0
        %536 = vmatprep.subr.mxu0 0.0
        %537 = vmatpush1.xpose.msra.mxu0 0.0
        %538 = vmatprep.subr.mxu0 0.0
        %539 = vmatpush1.xpose.msra.mxu0 0.0
        %540 = vmatprep.subr.mxu0 0.0
        %541 = vmatpush1.xpose.msra.mxu0 0.0
        %542 = vmatprep.subr.mxu0 0.0
        %543 = vmatpush1.xpose.msra.mxu0 0.0
        %544 = vmatprep.subr.mxu0 0.0
        %545 = vmatpush1.xpose.msra.mxu0 0.0
        %546 = vmatprep.subr.mxu0 0.0
        %547 = vmatpush1.xpose.msra.mxu0 0.0
        %548 = vmatprep.subr.mxu0 0.0
        %549 = vmatpush1.xpose.msra.mxu0 0.0
        %550 = vmatprep.subr.mxu0 0.0
        %551 = vmatpush1.xpose.msra.mxu0 0.0
        %552 = vmatprep.subr.mxu0 0.0
        %553 = vmatpush1.xpose.msra.mxu0 0.0
        %554 = vmatprep.subr.mxu0 0.0
        %555 = vmatpush1.xpose.msra.mxu0 0.0
        %556 = vmatprep.subr.mxu0 0.0
        %557 = vmatpush1.xpose.msra.mxu0 0.0
        %558 = vmatprep.subr.mxu0 0.0
        %559 = vmatpush1.xpose.msra.mxu0 0.0
        %560 = vmatprep.mubr.f32.mxu0 0.0
        %561 = vmatmul.mubr.f32.gmra.mrb[0].mxu0 %v492
        %v562 = vpop.f32.mrb[0].mxu0
        %v563 = vadd.f32 0.0, %v562
        %v564 = vpop.f32.mrb[0].mxu0
        %565 = vdwg.mxu0
        %v566 = vmul.f32 %v563, 0.35355338
        %v567 = vsel %vm324, %v566, -inf
        %568 = vmax.xlane.f32.xlu0 %v567
        %v569 = vpop.xlane.xlu0 %568
        %v570 = vsub.f32 %v566, %v569
        %v571 = vmul.f32 %v570, 1.442695
        %v572 = vpow.pop %v571
        %v573 = vsel %vm324, %v572, 0.0
        %574 = vadd.xlane.f32.xlu0 %v573
        %v575 = vpop.xlane.xlu0 %574
        %v576 = vrcp.pop %v575
        %v577 = vmul.f32 %v572, %v576
        %578 = vrot.lane.b32.xlu0 %v318, 56
        %v579 = vpop.permute.xlu0 %578
        %v582 = vsel %vm324, %v577, 0
        %584 = vmatprep.subr.mxu0 0.0
        %585 = vmatpush1.msra.mxu0 %v579
        %586 = vmatprep.subr.mxu0 0.0
        %587 = vmatpush1.msra.mxu0 0.0
        %588 = vmatprep.subr.mxu0 0.0
        %589 = vmatpush1.msra.mxu0 0.0
        %590 = vmatprep.subr.mxu0 0.0
        %591 = vmatpush1.msra.mxu0 0.0
        %592 = vmatprep.subr.mxu0 0.0
        %593 = vmatpush1.msra.mxu0 0.0
        %594 = vmatprep.subr.mxu0 0.0
        %595 = vmatpush1.msra.mxu0 0.0
        %596 = vmatprep.subr.mxu0 0.0
        %597 = vmatpush1.msra.mxu0 0.0
        %598 = vmatprep.subr.mxu0 0.0
        %599 = vmatpush1.msra.mxu0 0.0
        %600 = vmatprep.subr.mxu0 0.0
        %601 = vmatpush1.msra.mxu0 0.0
        %602 = vmatprep.subr.mxu0 0.0
        %603 = vmatpush1.msra.mxu0 0.0
        %604 = vmatprep.subr.mxu0 0.0
        %605 = vmatpush1.msra.mxu0 0.0
        %606 = vmatprep.subr.mxu0 0.0
        %607 = vmatpush1.msra.mxu0 0.0
        %608 = vmatprep.subr.mxu0 0.0
        %609 = vmatpush1.msra.mxu0 0.0
        %610 = vmatprep.subr.mxu0 0.0
        %611 = vmatpush1.msra.mxu0 0.0
        %612 = vmatprep.subr.mxu0 0.0
        %613 = vmatpush1.msra.mxu0 0.0
        %614 = vmatprep.subr.mxu0 0.0
        %615 = vmatpush1.msra.mxu0 0.0
        %616 = vmatprep.subr.mxu0 0.0
        %617 = vmatpush1.msra.mxu0 0.0
        %618 = vmatprep.subr.mxu0 0.0
        %619 = vmatpush1.msra.mxu0 0.0
        %620 = vmatprep.subr.mxu0 0.0
        %621 = vmatpush1.msra.mxu0 0.0
        %622 = vmatprep.subr.mxu0 0.0
        %623 = vmatpush1.msra.mxu0 0.0
        %624 = vmatprep.subr.mxu0 0.0
        %625 = vmatpush1.msra.mxu0 0.0
        %626 = vmatprep.subr.mxu0 0.0
        %627 = vmatpush1.msra.mxu0 0.0
        %628 = vmatprep.subr.mxu0 0.0
        %629 = vmatpush1.msra.mxu0 0.0
        %630 = vmatprep.subr.mxu0 0.0
        %631 = vmatpush1.msra.mxu0 0.0
        %632 = vmatprep.subr.mxu0 0.0
        %633 = vmatpush1.msra.mxu0 0.0
        %634 = vmatprep.subr.mxu0 0.0
        %635 = vmatpush1.msra.mxu0 0.0
        %636 = vmatprep.subr.mxu0 0.0
        %637 = vmatpush1.msra.mxu0 0.0
        %638 = vmatprep.subr.mxu0 0.0
        %639 = vmatpush1.msra.mxu0 0.0
        %640 = vmatprep.subr.mxu0 0.0
        %641 = vmatpush1.msra.mxu0 0.0
        %642 = vmatprep.subr.mxu0 0.0
        %643 = vmatpush1.msra.mxu0 0.0
        %644 = vmatprep.subr.mxu0 0.0
        %645 = vmatpush1.msra.mxu0 0.0
        %646 = vmatprep.subr.mxu0 0.0
        %647 = vmatpush1.msra.mxu0 0.0
        %648 = vmatprep.mubr.f32.mxu0 0.0
        %649 = vmatmul.mubr.f32.gmra.mrb[0].mxu0 %v582
        %v650 = vpop.f32.mrb[0].mxu0
        %v651 = vadd.f32 0.0, %v650
        %v652 = vpop.f32.mrb[0].mxu0
        %653 = vdwg.mxu0
        %655 = vrot.lane.b32.xlu0 %v651, 8
        %v656 = vpop.permute.xlu0 %655
        %vm658 = vcmask 130112
        %659 = vst.msk [vmem:[#allocation2] sm:$0xff] %vm658, %v656
        %660 = vrot.lane.b32.xlu0 %v318, 112
        %v661 = vpop.permute.xlu0 %660
        %662 = vrot.lane.b32.xlu0 %v318, 80
        %v663 = vpop.permute.xlu0 %662
        %v664 = vsel %vm324, %v661, 0
        %v666 = vsel %vm324, %v663, 0
        %668 = vmatprep.subr.mxu0 0.0
        %669 = vmatpush1.xpose.msra.mxu0 %v666
        %670 = vmatprep.subr.mxu0 0.0
        %671 = vmatpush1.xpose.msra.mxu0 0.0
        %672 = vmatprep.subr.mxu0 0.0
        %673 = vmatpush1.xpose.msra.mxu0 0.0
        %674 = vmatprep.subr.mxu0 0.0
        %675 = vmatpush1.xpose.msra.mxu0 0.0
        %676 = vmatprep.subr.mxu0 0.0
        %677 = vmatpush1.xpose.msra.mxu0 0.0
        %678 = vmatprep.subr.mxu0 0.0
        %679 = vmatpush1.xpose.msra.mxu0 0.0
        %680 = vmatprep.subr.mxu0 0.0
        %681 = vmatpush1.xpose.msra.mxu0 0.0
        %682 = vmatprep.subr.mxu0 0.0
        %683 = vmatpush1.xpose.msra.mxu0 0.0
        %684 = vmatprep.subr.mxu0 0.0
        %685 = vmatpush1.xpose.msra.mxu0 0.0
        %686 = vmatprep.subr.mxu0 0.0
        %687 = vmatpush1.xpose.msra.mxu0 0.0
        %688 = vmatprep.subr.mxu0 0.0
        %689 = vmatpush1.xpose.msra.mxu0 0.0
        %690 = vmatprep.subr.mxu0 0.0
        %691 = vmatpush1.xpose.msra.mxu0 0.0
        %692 = vmatprep.subr.mxu0 0.0
        %693 = vmatpush1.xpose.msra.mxu0 0.0
        %694 = vmatprep.subr.mxu0 0.0
        %695 = vmatpush1.xpose.msra.mxu0 0.0
        %696 = vmatprep.subr.mxu0 0.0
        %697 = vmatpush1.xpose.msra.mxu0 0.0
        %698 = vmatprep.subr.mxu0 0.0
        %699 = vmatpush1.xpose.msra.mxu0 0.0
        %700 = vmatprep.subr.mxu0 0.0
        %701 = vmatpush1.xpose.msra.mxu0 0.0
        %702 = vmatprep.subr.mxu0 0.0
        %703 = vmatpush1.xpose.msra.mxu0 0.0
        %704 = vmatprep.subr.mxu0 0.0
        %705 = vmatpush1.xpose.msra.mxu0 0.0
        %706 = vmatprep.subr.mxu0 0.0
        %707 = vmatpush1.xpose.msra.mxu0 0.0
        %708 = vmatprep.subr.mxu0 0.0
        %709 = vmatpush1.xpose.msra.mxu0 0.0
        %710 = vmatprep.subr.mxu0 0.0
        %711 = vmatpush1.xpose.msra.mxu0 0.0
        %712 = vmatprep.subr.mxu0 0.0
        %713 = vmatpush1.xpose.msra.mxu0 0.0
        %714 = vmatprep.subr.mxu0 0.0
        %715 = vmatpush1.xpose.msra.mxu0 0.0
        %716 = vmatprep.subr.mxu0 0.0
        %717 = vmatpush1.xpose.msra.mxu0 0.0
        %718 = vmatprep.subr.mxu0 0.0
        %719 = vmatpush1.xpose.msra.mxu0 0.0
        %720 = vmatprep.subr.mxu0 0.0
        %721 = vmatpush1.xpose.msra.mxu0 0.0
        %722 = vmatprep.subr.mxu0 0.0
        %723 = vmatpush1.xpose.msra.mxu0 0.0
        %724 = vmatprep.subr.mxu0 0.0
        %725 = vmatpush1.xpose.msra.mxu0 0.0
        %726 = vmatprep.subr.mxu0 0.0
        %727 = vmatpush1.xpose.msra.mxu0 0.0
        %728 = vmatprep.subr.mxu0 0.0
        %729 = vmatpush1.xpose.msra.mxu0 0.0
        %730 = vmatprep.subr.mxu0 0.0
        %731 = vmatpush1.xpose.msra.mxu0 0.0
        %732 = vmatprep.mubr.f32.mxu0 0.0
        %733 = vmatmul.mubr.f32.gmra.mrb[0].mxu0 %v664
        %v734 = vpop.f32.mrb[0].mxu0
        %v735 = vadd.f32 0.0, %v734
        %v736 = vpop.f32.mrb[0].mxu0
        %737 = vdwg.mxu0
        %v738 = vmul.f32 %v735, 0.35355338
        %v739 = vsel %vm324, %v738, -inf
        %740 = vmax.xlane.f32.xlu0 %v739
        %v741 = vpop.xlane.xlu0 %740
        %v742 = vsub.f32 %v738, %v741
        %v743 = vmul.f32 %v742, 1.442695
        %v744 = vpow.pop %v743
        %v745 = vsel %vm324, %v744, 0.0
        %746 = vadd.xlane.f32.xlu0 %v745
        %v747 = vpop.xlane.xlu0 %746
        %v748 = vrcp.pop %v747
        %v749 = vmul.f32 %v744, %v748
        %750 = vrot.lane.b32.xlu0 %v318, 48
        %v751 = vpop.permute.xlu0 %750
        %v754 = vsel %vm324, %v749, 0
        %756 = vmatprep.subr.mxu0 0.0
        %757 = vmatpush1.msra.mxu0 %v751
        %758 = vmatprep.subr.mxu0 0.0
        %759 = vmatpush1.msra.mxu0 0.0
        %760 = vmatprep.subr.mxu0 0.0
        %761 = vmatpush1.msra.mxu0 0.0
        %762 = vmatprep.subr.mxu0 0.0
        %763 = vmatpush1.msra.mxu0 0.0
        %764 = vmatprep.subr.mxu0 0.0
        %765 = vmatpush1.msra.mxu0 0.0
        %766 = vmatprep.subr.mxu0 0.0
        %767 = vmatpush1.msra.mxu0 0.0
        %768 = vmatprep.subr.mxu0 0.0
        %769 = vmatpush1.msra.mxu0 0.0
        %770 = vmatprep.subr.mxu0 0.0
        %771 = vmatpush1.msra.mxu0 0.0
        %772 = vmatprep.subr.mxu0 0.0
        %773 = vmatpush1.msra.mxu0 0.0
        %774 = vmatprep.subr.mxu0 0.0
        %775 = vmatpush1.msra.mxu0 0.0
        %776 = vmatprep.subr.mxu0 0.0
        %777 = vmatpush1.msra.mxu0 0.0
        %778 = vmatprep.subr.mxu0 0.0
        %779 = vmatpush1.msra.mxu0 0.0
        %780 = vmatprep.subr.mxu0 0.0
        %781 = vmatpush1.msra.mxu0 0.0
        %782 = vmatprep.subr.mxu0 0.0
        %783 = vmatpush1.msra.mxu0 0.0
        %784 = vmatprep.subr.mxu0 0.0
        %785 = vmatpush1.msra.mxu0 0.0
        %786 = vmatprep.subr.mxu0 0.0
        %787 = vmatpush1.msra.mxu0 0.0
        %788 = vmatprep.subr.mxu0 0.0
        %789 = vmatpush1.msra.mxu0 0.0
        %790 = vmatprep.subr.mxu0 0.0
        %791 = vmatpush1.msra.mxu0 0.0
        %792 = vmatprep.subr.mxu0 0.0
        %793 = vmatpush1.msra.mxu0 0.0
        %794 = vmatprep.subr.mxu0 0.0
        %795 = vmatpush1.msra.mxu0 0.0
        %796 = vmatprep.subr.mxu0 0.0
        %797 = vmatpush1.msra.mxu0 0.0
        %798 = vmatprep.subr.mxu0 0.0
        %799 = vmatpush1.msra.mxu0 0.0
        %800 = vmatprep.subr.mxu0 0.0
        %801 = vmatpush1.msra.mxu0 0.0
        %802 = vmatprep.subr.mxu0 0.0
        %803 = vmatpush1.msra.mxu0 0.0
        %804 = vmatprep.subr.mxu0 0.0
        %805 = vmatpush1.msra.mxu0 0.0
        %806 = vmatprep.subr.mxu0 0.0
        %807 = vmatpush1.msra.mxu0 0.0
        %808 = vmatprep.subr.mxu0 0.0
        %809 = vmatpush1.msra.mxu0 0.0
        %810 = vmatprep.subr.mxu0 0.0
        %811 = vmatpush1.msra.mxu0 0.0
        %812 = vmatprep.subr.mxu0 0.0
        %813 = vmatpush1.msra.mxu0 0.0
        %814 = vmatprep.subr.mxu0 0.0
        %815 = vmatpush1.msra.mxu0 0.0
        %816 = vmatprep.subr.mxu0 0.0
        %817 = vmatpush1.msra.mxu0 0.0
        %818 = vmatprep.subr.mxu0 0.0
        %819 = vmatpush1.msra.mxu0 0.0
        %820 = vmatprep.mubr.f32.mxu0 0.0
        %821 = vmatmul.mubr.f32.gmra.mrb[0].mxu0 %v754
        %v822 = vpop.f32.mrb[0].mxu0
        %v823 = vadd.f32 0.0, %v822
        %v824 = vpop.f32.mrb[0].mxu0
        %825 = vdwg.mxu0
        %827 = vrot.lane.b32.xlu0 %v823, 16
        %v828 = vpop.permute.xlu0 %827
        %vm830 = vcmask 195712
        %831 = vst.msk [vmem:[#allocation2] sm:$0xff] %vm830, %v828
        %832 = vrot.lane.b32.xlu0 %v318, 104
        %v833 = vpop.permute.xlu0 %832
        %834 = vrot.lane.b32.xlu0 %v318, 72
        %v835 = vpop.permute.xlu0 %834
        %v836 = vsel %vm324, %v833, 0
        %v838 = vsel %vm324, %v835, 0
        %840 = vmatprep.subr.mxu0 0.0
        %841 = vmatpush1.xpose.msra.mxu0 %v838
        %842 = vmatprep.subr.mxu0 0.0
        %843 = vmatpush1.xpose.msra.mxu0 0.0
        %844 = vmatprep.subr.mxu0 0.0
        %845 = vmatpush1.xpose.msra.mxu0 0.0
        %846 = vmatprep.subr.mxu0 0.0
        %847 = vmatpush1.xpose.msra.mxu0 0.0
        %848 = vmatprep.subr.mxu0 0.0
        %849 = vmatpush1.xpose.msra.mxu0 0.0
        %850 = vmatprep.subr.mxu0 0.0
        %851 = vmatpush1.xpose.msra.mxu0 0.0
        %852 = vmatprep.subr.mxu0 0.0
        %853 = vmatpush1.xpose.msra.mxu0 0.0
        %854 = vmatprep.subr.mxu0 0.0
        %855 = vmatpush1.xpose.msra.mxu0 0.0
        %856 = vmatprep.subr.mxu0 0.0
        %857 = vmatpush1.xpose.msra.mxu0 0.0
        %858 = vmatprep.subr.mxu0 0.0
        %859 = vmatpush1.xpose.msra.mxu0 0.0
        %860 = vmatprep.subr.mxu0 0.0
        %861 = vmatpush1.xpose.msra.mxu0 0.0
        %862 = vmatprep.subr.mxu0 0.0
        %863 = vmatpush1.xpose.msra.mxu0 0.0
        %864 = vmatprep.subr.mxu0 0.0
        %865 = vmatpush1.xpose.msra.mxu0 0.0
        %866 = vmatprep.subr.mxu0 0.0
        %867 = vmatpush1.xpose.msra.mxu0 0.0
        %868 = vmatprep.subr.mxu0 0.0
        %869 = vmatpush1.xpose.msra.mxu0 0.0
        %870 = vmatprep.subr.mxu0 0.0
        %871 = vmatpush1.xpose.msra.mxu0 0.0
        %872 = vmatprep.subr.mxu0 0.0
        %873 = vmatpush1.xpose.msra.mxu0 0.0
        %874 = vmatprep.subr.mxu0 0.0
        %875 = vmatpush1.xpose.msra.mxu0 0.0
        %876 = vmatprep.subr.mxu0 0.0
        %877 = vmatpush1.xpose.msra.mxu0 0.0
        %878 = vmatprep.subr.mxu0 0.0
        %879 = vmatpush1.xpose.msra.mxu0 0.0
        %880 = vmatprep.subr.mxu0 0.0
        %881 = vmatpush1.xpose.msra.mxu0 0.0
        %882 = vmatprep.subr.mxu0 0.0
        %883 = vmatpush1.xpose.msra.mxu0 0.0
        %884 = vmatprep.subr.mxu0 0.0
        %885 = vmatpush1.xpose.msra.mxu0 0.0
        %886 = vmatprep.subr.mxu0 0.0
        %887 = vmatpush1.xpose.msra.mxu0 0.0
        %888 = vmatprep.subr.mxu0 0.0
        %889 = vmatpush1.xpose.msra.mxu0 0.0
        %890 = vmatprep.subr.mxu0 0.0
        %891 = vmatpush1.xpose.msra.mxu0 0.0
        %892 = vmatprep.subr.mxu0 0.0
        %893 = vmatpush1.xpose.msra.mxu0 0.0
        %894 = vmatprep.subr.mxu0 0.0
        %895 = vmatpush1.xpose.msra.mxu0 0.0
        %896 = vmatprep.subr.mxu0 0.0
        %897 = vmatpush1.xpose.msra.mxu0 0.0
        %898 = vmatprep.subr.mxu0 0.0
        %899 = vmatpush1.xpose.msra.mxu0 0.0
        %900 = vmatprep.subr.mxu0 0.0
        %901 = vmatpush1.xpose.msra.mxu0 0.0
        %902 = vmatprep.subr.mxu0 0.0
        %903 = vmatpush1.xpose.msra.mxu0 0.0
        %904 = vmatprep.mubr.f32.mxu0 0.0
        %905 = vmatmul.mubr.f32.gmra.mrb[0].mxu0 %v836
        %v906 = vpop.f32.mrb[0].mxu0
        %v907 = vadd.f32 0.0, %v906
        %v908 = vpop.f32.mrb[0].mxu0
        %909 = vdwg.mxu0
        %v910 = vmul.f32 %v907, 0.35355338
        %v911 = vsel %vm324, %v910, -inf
        %912 = vmax.xlane.f32.xlu0 %v911
        %v913 = vpop.xlane.xlu0 %912
        %v914 = vsub.f32 %v910, %v913
        %v915 = vmul.f32 %v914, 1.442695
        %v916 = vpow.pop %v915
        %v917 = vsel %vm324, %v916, 0.0
        %918 = vadd.xlane.f32.xlu0 %v917
        %v919 = vpop.xlane.xlu0 %918
        %v920 = vrcp.pop %v919
        %v921 = vmul.f32 %v916, %v920
        %922 = vrot.lane.b32.xlu0 %v318, 40
        %v923 = vpop.permute.xlu0 %922
        %v926 = vsel %vm324, %v921, 0
        %928 = vmatprep.subr.mxu0 0.0
        %929 = vmatpush1.msra.mxu0 %v923
        %930 = vmatprep.subr.mxu0 0.0
        %931 = vmatpush1.msra.mxu0 0.0
        %932 = vmatprep.subr.mxu0 0.0
        %933 = vmatpush1.msra.mxu0 0.0
        %934 = vmatprep.subr.mxu0 0.0
        %935 = vmatpush1.msra.mxu0 0.0
        %936 = vmatprep.subr.mxu0 0.0
        %937 = vmatpush1.msra.mxu0 0.0
        %938 = vmatprep.subr.mxu0 0.0
        %939 = vmatpush1.msra.mxu0 0.0
        %940 = vmatprep.subr.mxu0 0.0
        %941 = vmatpush1.msra.mxu0 0.0
        %942 = vmatprep.subr.mxu0 0.0
        %943 = vmatpush1.msra.mxu0 0.0
        %944 = vmatprep.subr.mxu0 0.0
        %945 = vmatpush1.msra.mxu0 0.0
        %946 = vmatprep.subr.mxu0 0.0
        %947 = vmatpush1.msra.mxu0 0.0
        %948 = vmatprep.subr.mxu0 0.0
        %949 = vmatpush1.msra.mxu0 0.0
        %950 = vmatprep.subr.mxu0 0.0
        %951 = vmatpush1.msra.mxu0 0.0
        %952 = vmatprep.subr.mxu0 0.0
        %953 = vmatpush1.msra.mxu0 0.0
        %954 = vmatprep.subr.mxu0 0.0
        %955 = vmatpush1.msra.mxu0 0.0
        %956 = vmatprep.subr.mxu0 0.0
        %957 = vmatpush1.msra.mxu0 0.0
        %958 = vmatprep.subr.mxu0 0.0
        %959 = vmatpush1.msra.mxu0 0.0
        %960 = vmatprep.subr.mxu0 0.0
        %961 = vmatpush1.msra.mxu0 0.0
        %962 = vmatprep.subr.mxu0 0.0
        %963 = vmatpush1.msra.mxu0 0.0
        %964 = vmatprep.subr.mxu0 0.0
        %965 = vmatpush1.msra.mxu0 0.0
        %966 = vmatprep.subr.mxu0 0.0
        %967 = vmatpush1.msra.mxu0 0.0
        %968 = vmatprep.subr.mxu0 0.0
        %969 = vmatpush1.msra.mxu0 0.0
        %970 = vmatprep.subr.mxu0 0.0
        %971 = vmatpush1.msra.mxu0 0.0
        %972 = vmatprep.subr.mxu0 0.0
        %973 = vmatpush1.msra.mxu0 0.0
        %974 = vmatprep.subr.mxu0 0.0
        %975 = vmatpush1.msra.mxu0 0.0
        %976 = vmatprep.subr.mxu0 0.0
        %977 = vmatpush1.msra.mxu0 0.0
        %978 = vmatprep.subr.mxu0 0.0
        %979 = vmatpush1.msra.mxu0 0.0
        %980 = vmatprep.subr.mxu0 0.0
        %981 = vmatpush1.msra.mxu0 0.0
        %982 = vmatprep.subr.mxu0 0.0
        %983 = vmatpush1.msra.mxu0 0.0
        %984 = vmatprep.subr.mxu0 0.0
        %985 = vmatpush1.msra.mxu0 0.0
        %986 = vmatprep.subr.mxu0 0.0
        %987 = vmatpush1.msra.mxu0 0.0
        %988 = vmatprep.subr.mxu0 0.0
        %989 = vmatpush1.msra.mxu0 0.0
        %990 = vmatprep.subr.mxu0 0.0
        %991 = vmatpush1.msra.mxu0 0.0
        %992 = vmatprep.mubr.f32.mxu0 0.0
        %993 = vmatmul.mubr.f32.gmra.mrb[0].mxu0 %v926
        %v994 = vpop.f32.mrb[0].mxu0
        %v995 = vadd.f32 0.0, %v994
        %v996 = vpop.f32.mrb[0].mxu0
        %997 = vdwg.mxu0
        %999 = vrot.lane.b32.xlu0 %v995, 24
        %v1000 = vpop.permute.xlu0 %999
        %vm1002 = vcmask 261312
        %1003 = vst.msk [vmem:[#allocation2] sm:$0xff] %vm1002, %v1000
        %v1004 = vld [vmem:[#allocation2] sm:$0xff]
        %v1005 = vld [vmem:[#allocation8] sm:$0xff]
        %v1006 = vld [vmem:[#allocation8 + $0x8] sm:$0xff]
        %v1007 = vld [vmem:[#allocation8 + $0x10] sm:$0xff]
        %v1008 = vld [vmem:[#allocation8 + $0x18] sm:$0xff]
        %v1009 = vld [vmem:[%s3] sm:$0x1]
        %v1011 = vlaneseq
        %v1012 = vshrl.u32 %v1011, 7
        %v1013 = vsub.s32 0, %v1012
        %v1014 = vrot.slane %v1009, %v1013
        %v1017 = vsel %vm247, %v1004, 0
        %1019 = vmatprep.subr.mxu0 0.0
        %1020 = vmatpush1.msra.mxu0 %v1005
        %1021 = vmatprep.subr.mxu0 0.0
        %1022 = vmatpush1.msra.mxu0 %v1006
        %1023 = vmatprep.subr.mxu0 0.0
        %1024 = vmatpush1.msra.mxu0 %v1007
        %1025 = vmatprep.subr.mxu0 0.0
        %1026 = vmatpush1.msra.mxu0 %v1008
        %1027 = vmatprep.subr.mxu0 0.0
        %1028 = vmatpush1.msra.mxu0 0.0
        %1029 = vmatprep.subr.mxu0 0.0
        %1030 = vmatpush1.msra.mxu0 0.0
        %1031 = vmatprep.subr.mxu0 0.0
        %1032 = vmatpush1.msra.mxu0 0.0
        %1033 = vmatprep.subr.mxu0 0.0
        %1034 = vmatpush1.msra.mxu0 0.0
        %1035 = vmatprep.subr.mxu0 0.0
        %1036 = vmatpush1.msra.mxu0 0.0
        %1037 = vmatprep.subr.mxu0 0.0
        %1038 = vmatpush1.msra.mxu0 0.0
        %1039 = vmatprep.subr.mxu0 0.0
        %1040 = vmatpush1.msra.mxu0 0.0
        %1041 = vmatprep.subr.mxu0 0.0
        %1042 = vmatpush1.msra.mxu0 0.0
        %1043 = vmatprep.subr.mxu0 0.0
        %1044 = vmatpush1.msra.mxu0 0.0
        %1045 = vmatprep.subr.mxu0 0.0
        %1046 = vmatpush1.msra.mxu0 0.0
        %1047 = vmatprep.subr.mxu0 0.0
        %1048 = vmatpush1.msra.mxu0 0.0
        %1049 = vmatprep.subr.mxu0 0.0
        %1050 = vmatpush1.msra.mxu0 0.0
        %1051 = vmatprep.subr.mxu0 0.0
        %1052 = vmatpush1.msra.mxu0 0.0
        %1053 = vmatprep.subr.mxu0 0.0
        %1054 = vmatpush1.msra.mxu0 0.0
        %1055 = vmatprep.subr.mxu0 0.0
        %1056 = vmatpush1.msra.mxu0 0.0
        %1057 = vmatprep.subr.mxu0 0.0
        %1058 = vmatpush1.msra.mxu0 0.0
        %1059 = vmatprep.subr.mxu0 0.0
        %1060 = vmatpush1.msra.mxu0 0.0
        %1061 = vmatprep.subr.mxu0 0.0
        %1062 = vmatpush1.msra.mxu0 0.0
        %1063 = vmatprep.subr.mxu0 0.0
        %1064 = vmatpush1.msra.mxu0 0.0
        %1065 = vmatprep.subr.mxu0 0.0
        %1066 = vmatpush1.msra.mxu0 0.0
        %1067 = vmatprep.subr.mxu0 0.0
        %1068 = vmatpush1.msra.mxu0 0.0
        %1069 = vmatprep.subr.mxu0 0.0
        %1070 = vmatpush1.msra.mxu0 0.0
        %1071 = vmatprep.subr.mxu0 0.0
        %1072 = vmatpush1.msra.mxu0 0.0
        %1073 = vmatprep.subr.mxu0 0.0
        %1074 = vmatpush1.msra.mxu0 0.0
        %1075 = vmatprep.subr.mxu0 0.0
        %1076 = vmatpush1.msra.mxu0 0.0
        %1077 = vmatprep.subr.mxu0 0.0
        %1078 = vmatpush1.msra.mxu0 0.0
        %1079 = vmatprep.subr.mxu0 0.0
        %1080 = vmatpush1.msra.mxu0 0.0
        %1081 = vmatprep.subr.mxu0 0.0
        %1082 = vmatpush1.msra.mxu0 0.0
        %1083 = vmatprep.mubr.f32.mxu0 0.0
        %1084 = vmatmul.mubr.f32.gmra.mrb[0].mxu0 %v1017
        %v1085 = vpop.f32.mrb[0].mxu0
        %v1086 = vadd.f32 %v1014, %v1085
        %v1087 = vpop.f32.mrb[0].mxu0
        %1088 = vdwg.mxu0
        %1089 = vst.msk [vmem:[%s241] sm:$0xff] %vm247, %v1086
        %s1090 = sand.u32 %s119, 1
        %s1091 = scalar_lea.sflag [#allocation5], %s1090
        %s1092 = sand.u32 %s119, 1
        %s1093 = smul.addr %s1092, 8
        %s1094 = scalar_lea.vmem [#allocation9], %s1093
        // Predicated region
        $region49: #{tpu_custom_call.1} parent=35 // pred_check
          %p1095 = pneg %p129
        $region50: #{tpu_custom_call.1} parent=35 // pred_check_branch
          %1097 = sbr.rel (%p1095) target = $region52
        $region51: #{tpu_custom_call.1} parent=35 // pred_region
          %s1099 = ssub.s32 128, 128
          %1100 = vsyncadd %s1091, %s1099
          %s1101 = smul.addr %s22, 128
          %s1102 = scalar_lea.hbm %s4, %s1101
          %s1104 = sshll.u32 %s1094, 4
          %s1105 = int_to_ptr.vmem [resolvable:$true] %s1104
          %1107 = dma.vmem_to_hbm [thread:$0]  %s1105, 128, %s1102, %s1091
        $region52: #{tpu_custom_call.1} parent=35 // pred_fallthru
          _
      $region36: #{tpu_custom_call.1} parent=5 // pred_fallthru
        _
      %p1108 = scmp.le.s32.totalorder 2, %s17
      // Predicated region
      $region53: #{tpu_custom_call.1} parent=5 // pred_check
        %p1109 = pneg %p1108
      $region54: #{tpu_custom_call.1} parent=5 // pred_check_branch
        %1111 = sbr.rel (%p1109) target = $region56
      $region55: #{tpu_custom_call.1} parent=5 // pred_region
        %s1112 = ssub.s32 %s17, 2
        // Predicated region
        $region57: #{tpu_custom_call.1} parent=55 // pred_check
          %p1113 = pneg %p135
        $region58: #{tpu_custom_call.1} parent=55 // pred_check_branch
          %1115 = sbr.rel (%p1113) target = $region60
        $region59: #{tpu_custom_call.1} parent=55 // pred_region
          %s1116 = sand.u32 %s120, 1
          %s1117 = scalar_lea.sflag [#allocation5], %s1116
          %s1118 = sand.u32 %s120, 1
          %s1119 = smul.addr %s1118, 8
          %s1120 = scalar_lea.vmem [#allocation9], %s1119
          %1121 = dma.done %s1117, 128
        $region60: #{tpu_custom_call.1} parent=55 // pred_fallthru
          _
      $region56: #{tpu_custom_call.1} parent=5 // pred_fallthru
        _
    $region6: #{tpu_custom_call.1} parent=1 // loop_footer
      %s21 = sadd.s32 1, %s17
    $region7: #{tpu_custom_call.1} parent=1 // loop_footer_branch
      %16 = sbr.rel target = $region3
    $region8: #{tpu_custom_call.1} parent=1 // loop_exit
      _
    %1122 = vsyncpa [#allocation4], 1
    %s1123 = scalar_lea.sflag [#allocation4], 1
    %1124 = vsyncpa %s1123, 1
    %1125 = vsyncpa [#allocation7], 1
    %1126 = vsyncpa [#allocation5], 1
    %s1127 = scalar_lea.sflag [#allocation5], 1
    %1128 = vsyncpa %s1127, 1

</llo_original>
